<compile_context>
chip_gen: v7x
topology: tpu7x:2x2x1
jax: 0.10.0
libtpu: 0.0.40
codegen_flags: <defaults>
</compile_context>

<pallas_src>
import jax
import jax.numpy as jnp
from jax.experimental import pallas as pl
from jax.experimental.pallas import tpu as pltpu


def _sigmoid(v, approx):
    if approx:
        # exp on the EUP; approximate reciprocal also uses the EUP slot and
        # avoids the Newton-refinement VALU ops of the default f32 divide.
        return pl.reciprocal(1.0 + jnp.exp(-v), approx=True)
    return jax.nn.sigmoid(v)


def _silu(v, approx):
    return v * _sigmoid(v, approx)


def se_block_forward(x, params, *, tile_n=512, compute_dtype=jnp.bfloat16,
                     elementwise_dtype=jnp.float32, approx_sigmoid=False,
                     out_dtype=None):
    """SEBlock forward: out = x * sigmoid(silu(x @ W1 + b1) @ W2 + b2)."""
    w1, b1, w2, b2 = params
    n, hidden = x.shape
    r = w1.shape[1]
    out_dtype = compute_dtype if out_dtype is None else out_dtype
    edt = jnp.dtype(elementwise_dtype)
    # The approx-reciprocal path is f32-only (EUP vrcp); ignore the flag else.
    approx = bool(approx_sigmoid) and edt == jnp.dtype(jnp.float32)

    # --- one-time casts for the MXU (bf16 halves x + weight DMA bytes);
    #     biases stay f32 and are added to the f32 accumulator ---------------
    x_c = x.astype(compute_dtype)
    w1_c = w1.astype(compute_dtype)
    w2_c = w2.astype(compute_dtype)

    # --- batch tiling: multiple of 8 sublanes, padded so any n works --------
    tile = max(8, (min(tile_n, pl.cdiv(n, 8) * 8) // 8) * 8)
    n_pad = pl.cdiv(n, tile) * tile
    if n_pad != n:
        x_c = jnp.pad(x_c, ((0, n_pad - n), (0, 0)))

    def kernel(x_ref, w1_ref, b1_ref, w2_ref, b2_ref, o_ref):
        x_t = x_ref[...]  # already in compute dtype (cast once in the wrapper)
        # Squeeze: AdaptiveAvgPool1d(1) over the unsqueezed length-1 trailing
        # dim is an identity, so the excite MLP runs directly on x.
        z = (jnp.dot(x_t, w1_ref[...], preferred_element_type=jnp.float32)
             + b1_ref[...]).astype(edt)
        z = _silu(z, approx)
        a = (jnp.dot(z.astype(compute_dtype), w2_ref[...],
                     preferred_element_type=jnp.float32)
             + b2_ref[...]).astype(edt)
        attn = _sigmoid(a, approx)
        # Excite: elementwise gate; lane-dense natural-width writeback.
        o_ref[...] = (x_t.astype(edt) * attn).astype(o_ref.dtype)

    def const_spec(shape):
        # Grid-invariant blocks (weights / biases): same index every step.
        nd = len(shape)
        return pl.BlockSpec(shape, lambda i, _nd=nd: (0,) * _nd)

    grid_spec = pltpu.PrefetchScalarGridSpec(
        num_scalar_prefetch=0,
        grid=(n_pad // tile,),
        in_specs=[pl.BlockSpec((tile, hidden), lambda i: (i, 0)),
                  const_spec(w1_c.shape), const_spec(b1.shape),
                  const_spec(w2_c.shape), const_spec(b2.shape)],
        out_specs=pl.BlockSpec((tile, hidden), lambda i: (i, 0)),
    )

    def nbytes(a):
        return a.size * a.dtype.itemsize

    flops = 2 * n_pad * (2 * hidden * r) + 6 * n_pad * hidden
    transcendentals = n_pad * (r + hidden)  # one exp per SiLU / sigmoid elem
    bytes_accessed = (nbytes(x_c)
                      + n_pad * hidden * jnp.dtype(out_dtype).itemsize
                      + nbytes(w1_c) + nbytes(w2_c) + nbytes(b1) + nbytes(b2))

    out = pl.pallas_call(
        kernel,
        out_shape=jax.ShapeDtypeStruct((n_pad, hidden), out_dtype),
        grid_spec=grid_spec,
        compiler_params=pltpu.CompilerParams(
            dimension_semantics=("parallel",)),
        cost_estimate=pl.CostEstimate(
            flops=flops, transcendentals=transcendentals,
            bytes_accessed=bytes_accessed),
    )(x_c, w1_c, b1, w2_c, b2)

    return out[:n]


def se_block_reference(x, params):
    """Pure-JAX reference mirroring the PyTorch forward (f32, highest prec)."""
    w1, b1, w2, b2 = params
    hp = jax.lax.Precision.HIGHEST
    x_se = x  # AdaptiveAvgPool1d(1) over the length-1 trailing dim == identity
    z = jax.nn.silu(jnp.dot(x_se, w1, precision=hp) + b1)
    attn = jax.nn.sigmoid(jnp.dot(z, w2, precision=hp) + b2)
    return x * attn


def init_params(key, hidden_dim=64, reduction=16):
    """Deterministic synthetic init; shapes match SEBlock (weights transposed)."""
    r = hidden_dim // reduction
    ks = jax.random.split(key, 4)

    def rnd(k, shape, fan_in):
        return (jax.random.normal(k, shape, jnp.float32)
                * (1.0 / jnp.sqrt(jnp.float32(fan_in))))

    w1 = rnd(ks[0], (hidden_dim, r), hidden_dim)   # fc[0].weight.T
    b1 = rnd(ks[1], (1, r), hidden_dim)            # fc[0].bias
    w2 = rnd(ks[2], (r, hidden_dim), r)            # fc[2].weight.T
    b2 = rnd(ks[3], (1, hidden_dim), r)            # fc[2].bias
    return w1, b1, w2, b2


if __name__ == "__main__":
    key = jax.random.PRNGKey(0)
    k_param, k_x = jax.random.split(key)

    hidden_dim, reduction, batch = 64, 16, 12   # small shapes; r = 4
    params = init_params(k_param, hidden_dim, reduction)
    x = jax.random.normal(k_x, (batch, hidden_dim), jnp.float32)

    ref = se_block_reference(x, params)

    # 1) f32 accuracy mode: exact-semantics check vs the f32 reference.
    out_f32 = jax.block_until_ready(
        se_block_forward(x, params, compute_dtype=jnp.float32,
                         elementwise_dtype=jnp.float32, approx_sigmoid=False))
    assert out_f32.shape == (batch, hidden_dim)
    assert jnp.allclose(out_f32, ref, rtol=5e-4, atol=5e-4), (
        f"f32 max abs err {jnp.max(jnp.abs(out_f32 - ref))}")

    # 2) bf16 fast path (v6e/v7x style): bf16 MXU inputs, bf16 VPU/EUP
    #    elementwise, bf16 output writeback (half the HBM bytes).
    out_bf16 = jax.block_until_ready(
        se_block_forward(x, params, compute_dtype=jnp.bfloat16,
                         elementwise_dtype=jnp.bfloat16))
    assert out_bf16.shape == (batch, hidden_dim)
    assert out_bf16.dtype == jnp.bfloat16
    assert jnp.allclose(out_bf16.astype(jnp.float32), ref,
                        rtol=5e-2, atol=3e-2), (
        f"bf16 max abs err {jnp.max(jnp.abs(out_bf16.astype(jnp.float32) - ref))}")

    # 3) v5e-style path: bf16 MXU inputs, f32 elementwise (no bf16 VPU/EUP on
    #    v5e), approx EUP-reciprocal sigmoid, f32 output.
    out_v5e = jax.block_until_ready(
        se_block_forward(x, params, compute_dtype=jnp.bfloat16,
                         elementwise_dtype=jnp.float32, approx_sigmoid=True,
                         out_dtype=jnp.float32))
    assert out_v5e.shape == (batch, hidden_dim)
    assert jnp.allclose(out_v5e, ref, rtol=5e-2, atol=3e-2), (
        f"v5e-path max abs err {jnp.max(jnp.abs(out_v5e - ref))}")

    print("KERNEL_OK")
</pallas_src>

<mosaic_0001>
module attributes {stable_mosaic.version = 11 : i64} {
  func.func @kernel(%arg0: i32, %arg1: memref<16x64xf32, #tpu.memory_space<vmem>>, %arg2: memref<64x4xf32, #tpu.memory_space<vmem>>, %arg3: memref<1x4xf32, #tpu.memory_space<vmem>>, %arg4: memref<4x64xf32, #tpu.memory_space<vmem>>, %arg5: memref<1x64xf32, #tpu.memory_space<vmem>>, %arg6: memref<16x64xf32, #tpu.memory_space<vmem>>) attributes {dimension_semantics = [#tpu.dimension_semantics<parallel>], iteration_bounds = array<i64: 1>, scalar_prefetch = 0 : i64, scratch_operands = 0 : i64, tpu.core_type = #tpu.core_type<tc>, window_params = [{transform_indices = @transform_0, window_bounds = array<i64: 16, 64>}, {pipeline_mode = #tpu.pipeline_mode<synchronous>, transform_indices = @transform_1, window_bounds = array<i64: 64, 4>}, {pipeline_mode = #tpu.pipeline_mode<synchronous>, transform_indices = @transform_2, window_bounds = array<i64: 1, 4>}, {pipeline_mode = #tpu.pipeline_mode<synchronous>, transform_indices = @transform_3, window_bounds = array<i64: 4, 64>}, {pipeline_mode = #tpu.pipeline_mode<synchronous>, transform_indices = @transform_4, window_bounds = array<i64: 1, 64>}, {transform_indices = @transform_5, window_bounds = array<i64: 16, 64>}]} {
    %c0 = arith.constant 0 : index
    %c0_0 = arith.constant 0 : index
    %0 = vector.load %arg1[%c0, %c0_0] : memref<16x64xf32, #tpu.memory_space<vmem>>, vector<16x64xf32>
    %c0_1 = arith.constant 0 : index
    %c0_2 = arith.constant 0 : index
    %1 = vector.load %arg2[%c0_1, %c0_2] : memref<64x4xf32, #tpu.memory_space<vmem>>, vector<64x4xf32>
    %cst = arith.constant dense<0.000000e+00> : vector<16x4xf32>
    %2 = tpu.matmul %0, %1, %cst {dimension_numbers = #tpu.dot_dimension_numbers<[1], [0], [0], [1], [0, 0, 1, 1], [], []>} : vector<16x64xf32>, vector<64x4xf32>, vector<16x4xf32> -> vector<16x4xf32>
    %c0_3 = arith.constant 0 : index
    %c0_4 = arith.constant 0 : index
    %3 = vector.load %arg3[%c0_3, %c0_4] : memref<1x4xf32, #tpu.memory_space<vmem>>, vector<1x4xf32>
    %4 = vector.broadcast %3 : vector<1x4xf32> to vector<16x4xf32>
    %5 = arith.addf %2, %4 : vector<16x4xf32>
    %6 = arith.negf %5 : vector<16x4xf32>
    %7 = math.exp %6 : vector<16x4xf32>
    %cst_5 = arith.constant 1.000000e+00 : f32
    %8 = vector.broadcast %cst_5 : f32 to vector<16x4xf32>
    %9 = arith.addf %8, %7 : vector<16x4xf32>
    %10 = arith.divf %8, %9 : vector<16x4xf32>
    %11 = arith.mulf %5, %10 : vector<16x4xf32>
    %c0_6 = arith.constant 0 : index
    %c0_7 = arith.constant 0 : index
    %12 = vector.load %arg4[%c0_6, %c0_7] : memref<4x64xf32, #tpu.memory_space<vmem>>, vector<4x64xf32>
    %cst_8 = arith.constant dense<0.000000e+00> : vector<16x64xf32>
    %13 = tpu.matmul %11, %12, %cst_8 {dimension_numbers = #tpu.dot_dimension_numbers<[1], [0], [0], [1], [0, 0, 1, 1], [], []>} : vector<16x4xf32>, vector<4x64xf32>, vector<16x64xf32> -> vector<16x64xf32>
    %c0_9 = arith.constant 0 : index
    %c0_10 = arith.constant 0 : index
    %14 = vector.load %arg5[%c0_9, %c0_10] : memref<1x64xf32, #tpu.memory_space<vmem>>, vector<1x64xf32>
    %15 = vector.broadcast %14 : vector<1x64xf32> to vector<16x64xf32>
    %16 = arith.addf %13, %15 : vector<16x64xf32>
    %17 = arith.negf %16 : vector<16x64xf32>
    %18 = math.exp %17 : vector<16x64xf32>
    %cst_11 = arith.constant 1.000000e+00 : f32
    %19 = vector.broadcast %cst_11 : f32 to vector<16x64xf32>
    %20 = arith.addf %19, %18 : vector<16x64xf32>
    %21 = arith.divf %19, %20 : vector<16x64xf32>
    %22 = arith.mulf %0, %21 : vector<16x64xf32>
    %c0_12 = arith.constant 0 : index
    %c0_13 = arith.constant 0 : index
    %23 = vector.load %arg6[%c0_12, %c0_13] : memref<16x64xf32, #tpu.memory_space<vmem>>, vector<16x64xf32>
    tpu.vector_store %arg6[%c0_12, %c0_13], %22 {strides = array<i32>} : memref<16x64xf32, #tpu.memory_space<vmem>>, vector<16x64xf32>,
    return
  }
  func.func @transform_0(%arg0: i32) -> (i32, i32) {
    %c0_i32 = arith.constant 0 : i32
    %c0_i32_0 = arith.constant 0 : i32
    return %arg0, %c0_i32 : i32, i32
  }
  func.func @transform_1(%arg0: i32) -> (i32, i32) {
    %c0_i32 = arith.constant 0 : i32
    %c0_i32_0 = arith.constant 0 : i32
    %c0_i32_1 = arith.constant 0 : i32
    return %c0_i32, %c0_i32_0 : i32, i32
  }
  func.func @transform_2(%arg0: i32) -> (i32, i32) {
    %c0_i32 = arith.constant 0 : i32
    %c0_i32_0 = arith.constant 0 : i32
    %c0_i32_1 = arith.constant 0 : i32
    return %c0_i32, %c0_i32_0 : i32, i32
  }
  func.func @transform_3(%arg0: i32) -> (i32, i32) {
    %c0_i32 = arith.constant 0 : i32
    %c0_i32_0 = arith.constant 0 : i32
    %c0_i32_1 = arith.constant 0 : i32
    return %c0_i32, %c0_i32_0 : i32, i32
  }
  func.func @transform_4(%arg0: i32) -> (i32, i32) {
    %c0_i32 = arith.constant 0 : i32
    %c0_i32_0 = arith.constant 0 : i32
    %c0_i32_1 = arith.constant 0 : i32
    return %c0_i32, %c0_i32_0 : i32, i32
  }
  func.func @transform_5(%arg0: i32) -> (i32, i32) {
    %c0_i32 = arith.constant 0 : i32
    %c0_i32_0 = arith.constant 0 : i32
    return %arg0, %c0_i32 : i32, i32
  }
}

</mosaic_0001>

<llo_original>
// kernel: tpu_custom_call.1
$region0: #{tpu_custom_call.1}
  #allocation0 [shape = 'u32[]', space=smem, size = 0x4, offset = 0x4, fixed_abs, tag = 'smem constant byte address 0x4 - core index']
  #allocation1 [shape = 'u32[144,128]{1,0:T(1,128)}', space=vmem, size = 0x12000, scoped, tag = 'internal scratch']
  %s0 = inlined_call_operand.vmem [shape: f32[16,64], index: 0, kind: input, shape index: {}]
  %s1 = inlined_call_operand.vmem [shape: f32[64,4], index: 1, kind: input, shape index: {}]
  %s2 = inlined_call_operand.vmem [shape: f32[1,4], index: 2, kind: input, shape index: {}]
  %s3 = inlined_call_operand.vmem [shape: f32[4,64], index: 3, kind: input, shape index: {}]
  %s4 = inlined_call_operand.vmem [shape: f32[1,64], index: 4, kind: input, shape index: {}]
  %s5 = inlined_call_operand.hbm [shape: f32[16,64], index: 5, kind: output, shape index: {}]
  %s6 = sld [smem:[#allocation0]]
  $region30: #{tpu_custom_call.1} parent=0
    _
  %s8 = ssub.s32 1, %s6
  %s9 = scalar_select 0, %s8, %s6
  $region1: #{tpu_custom_call.1} parent=0
    #allocation2 [shape = 'u8[8192]{0}', space=vmem, size = 0x2000, scoped, tag = 'output window, operand 0, single buffered']
    #allocation3 [shape = 's32[1]{0}', space=sflag, size = 0x4, scoped, tag = 'scoped memory for tpu_custom_call.1']
    %10 = vsyncpa [#allocation3], 0
    // Predicated region
    $region2: #{tpu_custom_call.1} parent=1 // pred_check
      _
    $region3: #{tpu_custom_call.1} parent=1 // pred_check_branch
      %12 = sbr.rel (0) target = $region5
    $region4: #{tpu_custom_call.1} parent=1 // pred_region
      _
    $region5: #{tpu_custom_call.1} parent=1 // pred_fallthru
      _
    // Predicated region
    $region6: #{tpu_custom_call.1} parent=1 // pred_check
      _
    $region7: #{tpu_custom_call.1} parent=1 // pred_check_branch
      %14 = sbr.rel (0) target = $region9
    $region8: #{tpu_custom_call.1} parent=1 // pred_region
      _
    $region9: #{tpu_custom_call.1} parent=1 // pred_fallthru
      _
    // Predicated region
    $region10: #{tpu_custom_call.1} parent=1 // pred_check
      _
    $region11: #{tpu_custom_call.1} parent=1 // pred_check_branch
      %16 = sbr.rel (0) target = $region13
    $region12: #{tpu_custom_call.1} parent=1 // pred_region
      _
    $region13: #{tpu_custom_call.1} parent=1 // pred_fallthru
      _
    // Predicated region
    $region14: #{tpu_custom_call.1} parent=1 // pred_check
      _
    $region15: #{tpu_custom_call.1} parent=1 // pred_check_branch
      %18 = sbr.rel (0) target = $region17
    $region16: #{tpu_custom_call.1} parent=1 // pred_region
      _
    $region17: #{tpu_custom_call.1} parent=1 // pred_fallthru
      _
    // Predicated region
    $region18: #{tpu_custom_call.1} parent=1 // pred_check
      _
    $region19: #{tpu_custom_call.1} parent=1 // pred_check_branch
      %20 = sbr.rel (0) target = $region21
    $region20: #{tpu_custom_call.1} parent=1 // pred_region
      _
    $region21: #{tpu_custom_call.1} parent=1 // pred_fallthru
      _
    %v21 = vld [vmem:[%s0] sm:$0xff]
    %v22 = vld [vmem:[%s0 + $0x8] sm:$0xff]
    %v23 = vld [vmem:[%s1] sm:$0xff]
    %v24 = vld [vmem:[%s1 + $0x8] sm:$0xff]
    %v25 = vld [vmem:[%s1 + $0x10] sm:$0xff]
    %v26 = vld [vmem:[%s1 + $0x18] sm:$0xff]
    %v27 = vld [vmem:[%s1 + $0x20] sm:$0xff]
    %v28 = vld [vmem:[%s1 + $0x28] sm:$0xff]
    %v29 = vld [vmem:[%s1 + $0x30] sm:$0xff]
    %v30 = vld [vmem:[%s1 + $0x38] sm:$0xff]
    %v31 = vld [vmem:[%s2] sm:$0x1]
    %v33 = vlaneseq
    %v34 = vshrl.u32 %v33, 7
    %v35 = vsub.s32 0, %v34
    %v36 = vrot.slane %v31, %v35
    %vm38 = vcmask 523264
    %v40 = vsel %vm38, %v21, 0
    %v43 = vsel %vm38, %v22, 0
    %45 = vmatprep.subr.mxu0 0.0
    %46 = vmatpush1.msra.mxu0 %v23
    %47 = vmatprep.subr.mxu0 0.0
    %48 = vmatpush1.msra.mxu0 %v24
    %49 = vmatprep.subr.mxu0 0.0
    %50 = vmatpush1.msra.mxu0 %v25
    %51 = vmatprep.subr.mxu0 0.0
    %52 = vmatpush1.msra.mxu0 %v26
    %53 = vmatprep.subr.mxu0 0.0
    %54 = vmatpush1.msra.mxu0 %v27
    %55 = vmatprep.subr.mxu0 0.0
    %56 = vmatpush1.msra.mxu0 %v28
    %57 = vmatprep.subr.mxu0 0.0
    %58 = vmatpush1.msra.mxu0 %v29
    %59 = vmatprep.subr.mxu0 0.0
    %60 = vmatpush1.msra.mxu0 %v30
    %61 = vmatprep.subr.mxu0 0.0
    %62 = vmatpush1.msra.mxu0 0.0
    %63 = vmatprep.subr.mxu0 0.0
    %64 = vmatpush1.msra.mxu0 0.0
    %65 = vmatprep.subr.mxu0 0.0
    %66 = vmatpush1.msra.mxu0 0.0
    %67 = vmatprep.subr.mxu0 0.0
    %68 = vmatpush1.msra.mxu0 0.0
    %69 = vmatprep.subr.mxu0 0.0
    %70 = vmatpush1.msra.mxu0 0.0
    %71 = vmatprep.subr.mxu0 0.0
    %72 = vmatpush1.msra.mxu0 0.0
    %73 = vmatprep.subr.mxu0 0.0
    %74 = vmatpush1.msra.mxu0 0.0
    %75 = vmatprep.subr.mxu0 0.0
    %76 = vmatpush1.msra.mxu0 0.0
    %77 = vmatprep.subr.mxu0 0.0
    %78 = vmatpush1.msra.mxu0 0.0
    %79 = vmatprep.subr.mxu0 0.0
    %80 = vmatpush1.msra.mxu0 0.0
    %81 = vmatprep.subr.mxu0 0.0
    %82 = vmatpush1.msra.mxu0 0.0
    %83 = vmatprep.subr.mxu0 0.0
    %84 = vmatpush1.msra.mxu0 0.0
    %85 = vmatprep.subr.mxu0 0.0
    %86 = vmatpush1.msra.mxu0 0.0
    %87 = vmatprep.subr.mxu0 0.0
    %88 = vmatpush1.msra.mxu0 0.0
    %89 = vmatprep.subr.mxu0 0.0
    %90 = vmatpush1.msra.mxu0 0.0
    %91 = vmatprep.subr.mxu0 0.0
    %92 = vmatpush1.msra.mxu0 0.0
    %93 = vmatprep.subr.mxu0 0.0
    %94 = vmatpush1.msra.mxu0 0.0
    %95 = vmatprep.subr.mxu0 0.0
    %96 = vmatpush1.msra.mxu0 0.0
    %97 = vmatprep.subr.mxu0 0.0
    %98 = vmatpush1.msra.mxu0 0.0
    %99 = vmatprep.subr.mxu0 0.0
    %100 = vmatpush1.msra.mxu0 0.0
    %101 = vmatprep.subr.mxu0 0.0
    %102 = vmatpush1.msra.mxu0 0.0
    %103 = vmatprep.subr.mxu0 0.0
    %104 = vmatpush1.msra.mxu0 0.0
    %105 = vmatprep.subr.mxu0 0.0
    %106 = vmatpush1.msra.mxu0 0.0
    %107 = vmatprep.subr.mxu0 0.0
    %108 = vmatpush1.msra.mxu0 0.0
    %109 = vmatprep.mubr.f32.mxu0 0.0
    %110 = vmatmul.mubr.f32.gmra.mrb[0].mxu0 %v40
    %v111 = vpop.f32.mrb[0].mxu0
    %v112 = vadd.f32 %v36, %v111
    %v113 = vpop.f32.mrb[0].mxu0
    %114 = vmatprep.mubr.f32.mxu0 0.0
    %115 = vmatmul.mubr.f32.gmra.mrb[0].mxu0 %v43
    %v116 = vpop.f32.mrb[0].mxu0
    %v117 = vadd.f32 %v36, %v116
    %v118 = vpop.f32.mrb[0].mxu0
    %119 = vdwg.mxu0
    %v120 = vxor.u32 %v112, 2147483648
    %v121 = vxor.u32 %v117, 2147483648
    %v122 = vmul.f32 %v120, 1.442695
    %v123 = vpow.pop %v122
    %v124 = vmul.f32 %v121, 1.442695
    %v125 = vpow.pop %v124
    %v126 = vadd.f32 %v123, 1.0
    %v127 = vadd.f32 %v125, 1.0
    %v128 = vrcp.pop %v126
    %v129 = vmul.f32 1.0, %v128
    %v130 = vrcp.pop %v127
    %v131 = vmul.f32 1.0, %v130
    %v132 = vmul.f32 %v112, %v129
    %v133 = vmul.f32 %v117, %v131
    %v134 = vld [vmem:[%s3] sm:$0xf]
    %v135 = vld [vmem:[%s4] sm:$0x1]
    %v137 = vlaneseq
    %v138 = vshrl.u32 %v137, 7
    %v139 = vsub.s32 0, %v138
    %v140 = vrot.slane %v135, %v139
    %vm142 = vcmask 31744
    %v144 = vsel %vm142, %v132, 0
    %v147 = vsel %vm142, %v133, 0
    %vm149 = vcmask 1043456
    %v151 = vsel %vm149, %v134, 0
    %153 = vmatprep.subr.mxu0 0.0
    %154 = vmatpush1.msra.mxu0 %v151
    %155 = vmatprep.subr.mxu0 0.0
    %156 = vmatpush1.msra.mxu0 0.0
    %157 = vmatprep.subr.mxu0 0.0
    %158 = vmatpush1.msra.mxu0 0.0
    %159 = vmatprep.subr.mxu0 0.0
    %160 = vmatpush1.msra.mxu0 0.0
    %161 = vmatprep.subr.mxu0 0.0
    %162 = vmatpush1.msra.mxu0 0.0
    %163 = vmatprep.subr.mxu0 0.0
    %164 = vmatpush1.msra.mxu0 0.0
    %165 = vmatprep.subr.mxu0 0.0
    %166 = vmatpush1.msra.mxu0 0.0
    %167 = vmatprep.subr.mxu0 0.0
    %168 = vmatpush1.msra.mxu0 0.0
    %169 = vmatprep.subr.mxu0 0.0
    %170 = vmatpush1.msra.mxu0 0.0
    %171 = vmatprep.subr.mxu0 0.0
    %172 = vmatpush1.msra.mxu0 0.0
    %173 = vmatprep.subr.mxu0 0.0
    %174 = vmatpush1.msra.mxu0 0.0
    %175 = vmatprep.subr.mxu0 0.0
    %176 = vmatpush1.msra.mxu0 0.0
    %177 = vmatprep.subr.mxu0 0.0
    %178 = vmatpush1.msra.mxu0 0.0
    %179 = vmatprep.subr.mxu0 0.0
    %180 = vmatpush1.msra.mxu0 0.0
    %181 = vmatprep.subr.mxu0 0.0
    %182 = vmatpush1.msra.mxu0 0.0
    %183 = vmatprep.subr.mxu0 0.0
    %184 = vmatpush1.msra.mxu0 0.0
    %185 = vmatprep.subr.mxu0 0.0
    %186 = vmatpush1.msra.mxu0 0.0
    %187 = vmatprep.subr.mxu0 0.0
    %188 = vmatpush1.msra.mxu0 0.0
    %189 = vmatprep.subr.mxu0 0.0
    %190 = vmatpush1.msra.mxu0 0.0
    %191 = vmatprep.subr.mxu0 0.0
    %192 = vmatpush1.msra.mxu0 0.0
    %193 = vmatprep.subr.mxu0 0.0
    %194 = vmatpush1.msra.mxu0 0.0
    %195 = vmatprep.subr.mxu0 0.0
    %196 = vmatpush1.msra.mxu0 0.0
    %197 = vmatprep.subr.mxu0 0.0
    %198 = vmatpush1.msra.mxu0 0.0
    %199 = vmatprep.subr.mxu0 0.0
    %200 = vmatpush1.msra.mxu0 0.0
    %201 = vmatprep.subr.mxu0 0.0
    %202 = vmatpush1.msra.mxu0 0.0
    %203 = vmatprep.subr.mxu0 0.0
    %204 = vmatpush1.msra.mxu0 0.0
    %205 = vmatprep.subr.mxu0 0.0
    %206 = vmatpush1.msra.mxu0 0.0
    %207 = vmatprep.subr.mxu0 0.0
    %208 = vmatpush1.msra.mxu0 0.0
    %209 = vmatprep.subr.mxu0 0.0
    %210 = vmatpush1.msra.mxu0 0.0
    %211 = vmatprep.subr.mxu0 0.0
    %212 = vmatpush1.msra.mxu0 0.0
    %213 = vmatprep.subr.mxu0 0.0
    %214 = vmatpush1.msra.mxu0 0.0
    %215 = vmatprep.subr.mxu0 0.0
    %216 = vmatpush1.msra.mxu0 0.0
    %217 = vmatprep.mubr.f32.mxu0 0.0
    %218 = vmatmul.mubr.f32.gmra.mrb[0].mxu0 %v144
    %v219 = vpop.f32.mrb[0].mxu0
    %v220 = vadd.f32 %v140, %v219
    %v221 = vpop.f32.mrb[0].mxu0
    %222 = vmatprep.mubr.f32.mxu0 0.0
    %223 = vmatmul.mubr.f32.gmra.mrb[0].mxu0 %v147
    %v224 = vpop.f32.mrb[0].mxu0
    %v225 = vadd.f32 %v140, %v224
    %v226 = vpop.f32.mrb[0].mxu0
    %227 = vdwg.mxu0
    %v228 = vxor.u32 %v220, 2147483648
    %v229 = vxor.u32 %v225, 2147483648
    %v230 = vmul.f32 %v228, 1.442695
    %v231 = vpow.pop %v230
    %v232 = vmul.f32 %v229, 1.442695
    %v233 = vpow.pop %v232
    %v234 = vadd.f32 %v231, 1.0
    %v235 = vadd.f32 %v233, 1.0
    %v236 = vrcp.pop %v234
    %v237 = vmul.f32 1.0, %v236
    %v238 = vrcp.pop %v235
    %v239 = vmul.f32 1.0, %v238
    %v240 = vmul.f32 %v21, %v237
    %v241 = vmul.f32 %v22, %v239
    %242 = vst.msk [vmem:[#allocation2] sm:$0xff] %vm38, %v240
    %243 = vst.msk [vmem:[#allocation2 + $0x8] sm:$0xff] %vm38, %v241
    // Predicated region
    $region22: #{tpu_custom_call.1} parent=1 // pred_check
      _
    $region23: #{tpu_custom_call.1} parent=1 // pred_check_branch
      %245 = sbr.rel (0) target = $region25
    $region24: #{tpu_custom_call.1} parent=1 // pred_region
      %s247 = ssub.s32 256, 256
      %248 = vsyncadd [#allocation3], %s247
      %s249 = sshll.u32 [#allocation2], 4
      %s250 = int_to_ptr.vmem [resolvable:$true] %s249
      %255 = dma.vmem_to_hbm [thread:$0]  %s250, 256, %s5, [#allocation3], 128, 128, 8
    $region25: #{tpu_custom_call.1} parent=1 // pred_fallthru
      _
    // Predicated region
    $region26: #{tpu_custom_call.1} parent=1 // pred_check
      _
    $region27: #{tpu_custom_call.1} parent=1 // pred_check_branch
      %257 = sbr.rel (0) target = $region29
    $region28: #{tpu_custom_call.1} parent=1 // pred_region
      %258 = dma.done [#allocation3], 256
    $region29: #{tpu_custom_call.1} parent=1 // pred_fallthru
      _
    %259 = vsyncpa [#allocation3], 1

</llo_original>
